<compile_context>
chip_gen: v5e
topology: v5e:2x2
jax: 0.10.0
libtpu: 0.0.40
codegen_flags: <defaults>
</compile_context>

<pallas_src>
import jax
import jax.numpy as jnp
import numpy as np
from jax.experimental import pallas as pl
from jax.experimental.pallas import tpu as pltpu


def _lstm_kernel(x_ref,      # (B_blk, T)   batch-major input (input_dim == 1)
                 wx_ref,     # (1, 4H)      fused [g|i|f|o] input weights (transposed)
                 wh_ref,     # (H, 4H)      fused [g|i|f|o] recurrent weights (transposed)
                 b_ref,      # (1, 4H)      fused [g|i|f|o] biases (transposed)
                 wp_ref,     # (H, C_pad)   W_ph.T, zero-padded classes
                 bp_ref,     # (1, C_pad)   bias_p.T, padded classes get -1e30
                 out_ref):   # (B_blk, C_pad) softmax probabilities (lane-dense)
    B_blk, T = x_ref.shape
    H = wh_ref.shape[0]

    x = x_ref[...]                                   # (B_blk, T)
    wx = wx_ref[...]                                 # (1, 4H)
    w_h = wh_ref[...]                                # (H, 4H)
    bias = b_ref[...]                                # (1, 4H)

    h = jnp.zeros((B_blk, H), jnp.float32)
    c = jnp.zeros((B_blk, H), jnp.float32)

    # T is a static shape -> fully unrolled recurrence.  Per step the serial
    # chain is one fused (B,H)@(H,4H) MXU matmul, two full-width EUP
    # activations and a few VPU ops; the x*Wx+b term is h-independent filler.
    for t in range(T):
        xt = x[:, t][:, None]                        # (B_blk, 1), static slice
        pre = xt * wx + bias                         # (B_blk, 4H)
        if t > 0:
            pre = pre + jnp.dot(h, w_h, preferred_element_type=jnp.float32)
        tanh_all = jnp.tanh(pre)
        sig_all = jax.nn.sigmoid(pre)
        g = tanh_all[:, 0 * H:1 * H]
        i = sig_all[:, 1 * H:2 * H]
        f = sig_all[:, 2 * H:3 * H]
        o = sig_all[:, 3 * H:4 * H]
        if t > 0:
            c = g * i + c * f
        else:
            c = g * i                                # c_{-1} = 0
        h = jnp.tanh(c) * o

    # p = h @ W_ph.T + bias_p.T  -> (B_blk, C_pad); exact, numerically-stable
    # softmax.  Padded class columns have a -1e30 bias -> exp underflows to 0.
    p = jnp.dot(h, wp_ref[...], preferred_element_type=jnp.float32) + bp_ref[...]
    p = p - jnp.max(p, axis=-1, keepdims=True)
    e = jnp.exp(p)
    out_ref[...] = e / jnp.sum(e, axis=-1, keepdims=True)


def _round_up(n, m):
    return ((n + m - 1) // m) * m


@jax.jit
def lstm_forward(x, params):
    """x: (batch, seq_length) float32.  Returns (batch, num_classes) softmax probs."""
    (w_gx, w_gh, b_g, w_ix, w_ih, b_i,
     w_fx, w_fh, b_f, w_ox, w_oh, b_o, w_ph, b_p) = params

    B, T = x.shape
    H = w_gh.shape[0]
    C = w_ph.shape[0]
    if w_gx.shape[1] != 1:
        # The PyTorch forward (x[:, t].view(1, -1)) only works for input_dim == 1.
        raise ValueError("lstm_forward requires input_dim == 1")

    f32 = jnp.float32

    # Fused, batch-major ("right-multiply") weights; gate order [g, i, f, o].
    w_h_fused = jnp.concatenate([w_gh.T, w_ih.T, w_fh.T, w_oh.T], axis=1).astype(f32)  # (H, 4H)
    w_x_fused = jnp.concatenate([w_gx.T, w_ix.T, w_fx.T, w_ox.T], axis=1).astype(f32)  # (1, 4H)
    b_fused = jnp.concatenate([b_g.T, b_i.T, b_f.T, b_o.T], axis=1).astype(f32)        # (1, 4H)

    # Pad batch to the sublane/block boundary and classes to the lane width;
    # results are sliced back after the kernel (zero rows ride along for free).
    B_blk = min(128, _round_up(B, 8))
    B_pad = _round_up(B, B_blk)
    C_pad = _round_up(C, 128)

    x_pad = jnp.zeros((B_pad, T), f32).at[:B, :].set(x.astype(f32))
    w_p_pad = jnp.zeros((H, C_pad), f32).at[:, :C].set(w_ph.T.astype(f32))
    b_p_pad = jnp.full((1, C_pad), -1e30, f32).at[:, :C].set(b_p.T.astype(f32))

    grid = (B_pad // B_blk,)

    out = pl.pallas_call(
        _lstm_kernel,
        out_shape=jax.ShapeDtypeStruct((B_pad, C_pad), f32),
        grid=grid,
        in_specs=[
            pl.BlockSpec((B_blk, T), lambda b: (b, 0)),        # x, tiled over batch
            pl.BlockSpec((1, 4 * H), lambda b: (0, 0)),        # fused W_x
            pl.BlockSpec((H, 4 * H), lambda b: (0, 0)),        # fused W_h
            pl.BlockSpec((1, 4 * H), lambda b: (0, 0)),        # fused bias
            pl.BlockSpec((H, C_pad), lambda b: (0, 0)),        # W_ph.T (padded)
            pl.BlockSpec((1, C_pad), lambda b: (0, 0)),        # bias_p.T (padded)
        ],
        out_specs=pl.BlockSpec((B_blk, C_pad), lambda b: (b, 0)),
        compiler_params=pltpu.CompilerParams(
            dimension_semantics=("parallel",)),
    )(x_pad, w_x_fused, w_h_fused, b_fused, w_p_pad, b_p_pad)

    return out[:B, :C]


def init_params(key, input_dim, num_hidden, num_classes):
    ks = jax.random.split(key, 8)
    w_gx = jax.random.normal(ks[0], (num_hidden, input_dim), jnp.float32)
    w_gh = jax.random.normal(ks[1], (num_hidden, num_hidden), jnp.float32)
    b_g = jnp.zeros((num_hidden, 1), jnp.float32)
    w_ix = jax.random.normal(ks[2], (num_hidden, input_dim), jnp.float32)
    w_ih = jax.random.normal(ks[3], (num_hidden, num_hidden), jnp.float32)
    b_i = jnp.zeros((num_hidden, 1), jnp.float32)
    w_fx = jax.random.normal(ks[4], (num_hidden, input_dim), jnp.float32)
    w_fh = jax.random.normal(ks[5], (num_hidden, num_hidden), jnp.float32)
    b_f = jnp.zeros((num_hidden, 1), jnp.float32)
    w_ox = jax.random.normal(ks[6], (num_hidden, input_dim), jnp.float32)
    w_oh = jax.random.normal(ks[7], (num_hidden, num_hidden), jnp.float32)
    # bias_o is randn in the PyTorch module (intentional asymmetry, mirrored here).
    b_o = jax.random.normal(jax.random.fold_in(key, 99), (num_hidden, 1), jnp.float32)
    w_ph = jax.random.normal(jax.random.fold_in(key, 100), (num_classes, num_hidden), jnp.float32)
    b_p = jnp.zeros((num_classes, 1), jnp.float32)
    return (w_gx, w_gh, b_g, w_ix, w_ih, b_i,
            w_fx, w_fh, b_f, w_ox, w_oh, b_o, w_ph, b_p)


def lstm_reference(x, params):
    """Pure-JAX reference mirroring the PyTorch forward exactly."""
    (w_gx, w_gh, b_g, w_ix, w_ih, b_i,
     w_fx, w_fh, b_f, w_ox, w_oh, b_o, w_ph, b_p) = params
    B, T = x.shape
    H = w_gh.shape[0]
    h = jnp.zeros((H, B), jnp.float32)
    c = jnp.zeros((H, B), jnp.float32)
    for t in range(T):
        x_t = x[:, t].reshape(1, -1)                         # (1, B)
        g = jnp.tanh(w_gx @ x_t + w_gh @ h + b_g)
        i = jax.nn.sigmoid(w_ix @ x_t + w_ih @ h + b_i)
        f = jax.nn.sigmoid(w_fx @ x_t + w_fh @ h + b_f)
        o = jax.nn.sigmoid(w_ox @ x_t + w_oh @ h + b_o)
        c = g * i + c * f
        h = jnp.tanh(c) * o
    p = (w_ph @ h + b_p).T                                   # (B, C)
    return jax.nn.softmax(p, axis=1)


if __name__ == "__main__":
    seq_length = 8
    input_dim = 1          # PyTorch forward only works for input_dim == 1
    num_hidden = 32
    num_classes = 10
    batch_size = 2

    key = jax.random.PRNGKey(0)
    params = init_params(key, input_dim, num_hidden, num_classes)
    x = jax.random.normal(jax.random.fold_in(key, 7),
                          (batch_size, seq_length), jnp.float32)

    y = lstm_forward(x, params)
    jax.block_until_ready(y)

    y_ref = lstm_reference(x, params)
    assert y.shape == (batch_size, num_classes)
    np.testing.assert_allclose(np.asarray(y), np.asarray(y_ref), rtol=5e-4, atol=5e-4)
    print("KERNEL_OK")
</pallas_src>

<mosaic_0001>
module attributes {stable_mosaic.version = 11 : i64} {
  func.func @_lstm_kernel(%arg0: i32, %arg1: memref<8x8xf32, #tpu.memory_space<vmem>>, %arg2: memref<1x128xf32, #tpu.memory_space<vmem>>, %arg3: memref<32x128xf32, #tpu.memory_space<vmem>>, %arg4: memref<1x128xf32, #tpu.memory_space<vmem>>, %arg5: memref<32x128xf32, #tpu.memory_space<vmem>>, %arg6: memref<1x128xf32, #tpu.memory_space<vmem>>, %arg7: memref<8x128xf32, #tpu.memory_space<vmem>>) attributes {dimension_semantics = [#tpu.dimension_semantics<parallel>], iteration_bounds = array<i64: 1>, scalar_prefetch = 0 : i64, scratch_operands = 0 : i64, tpu.core_type = #tpu.core_type<tc>, window_params = [{transform_indices = @transform_0, window_bounds = array<i64: 8, 8>}, {pipeline_mode = #tpu.pipeline_mode<synchronous>, transform_indices = @transform_1, window_bounds = array<i64: 1, 128>}, {pipeline_mode = #tpu.pipeline_mode<synchronous>, transform_indices = @transform_2, window_bounds = array<i64: 32, 128>}, {pipeline_mode = #tpu.pipeline_mode<synchronous>, transform_indices = @transform_3, window_bounds = array<i64: 1, 128>}, {pipeline_mode = #tpu.pipeline_mode<synchronous>, transform_indices = @transform_4, window_bounds = array<i64: 32, 128>}, {pipeline_mode = #tpu.pipeline_mode<synchronous>, transform_indices = @transform_5, window_bounds = array<i64: 1, 128>}, {transform_indices = @transform_6, window_bounds = array<i64: 8, 128>}]} {
    %c0 = arith.constant 0 : index
    %c0_0 = arith.constant 0 : index
    %0 = vector.load %arg1[%c0, %c0_0] : memref<8x8xf32, #tpu.memory_space<vmem>>, vector<8x8xf32>
    %c0_1 = arith.constant 0 : index
    %c0_2 = arith.constant 0 : index
    %1 = vector.load %arg2[%c0_1, %c0_2] : memref<1x128xf32, #tpu.memory_space<vmem>>, vector<1x128xf32>
    %c0_3 = arith.constant 0 : index
    %c0_4 = arith.constant 0 : index
    %2 = vector.load %arg3[%c0_3, %c0_4] : memref<32x128xf32, #tpu.memory_space<vmem>>, vector<32x128xf32>
    %c0_5 = arith.constant 0 : index
    %c0_6 = arith.constant 0 : index
    %3 = vector.load %arg4[%c0_5, %c0_6] : memref<1x128xf32, #tpu.memory_space<vmem>>, vector<1x128xf32>
    %4 = vector.extract_strided_slice %0 {offsets = [0, 0], sizes = [8, 1], strides = [1, 1]} : vector<8x8xf32> to vector<8x1xf32>
    %5 = vector.shape_cast %4 : vector<8x1xf32> to vector<8xf32>
    %6 = vector.shape_cast %5 : vector<8xf32> to vector<8x1xf32>
    %7 = vector.broadcast %6 : vector<8x1xf32> to vector<8x128xf32>
    %8 = vector.broadcast %1 : vector<1x128xf32> to vector<8x128xf32>
    %9 = arith.mulf %7, %8 : vector<8x128xf32>
    %10 = vector.broadcast %3 : vector<1x128xf32> to vector<8x128xf32>
    %11 = arith.addf %9, %10 : vector<8x128xf32>
    %12 = math.tanh %11 : vector<8x128xf32>
    %13 = arith.negf %11 : vector<8x128xf32>
    %14 = math.exp %13 : vector<8x128xf32>
    %cst = arith.constant 1.000000e+00 : f32
    %15 = vector.broadcast %cst : f32 to vector<8x128xf32>
    %16 = arith.addf %15, %14 : vector<8x128xf32>
    %17 = arith.divf %15, %16 : vector<8x128xf32>
    %18 = vector.extract_strided_slice %12 {offsets = [0, 0], sizes = [8, 32], strides = [1, 1]} : vector<8x128xf32> to vector<8x32xf32>
    %19 = vector.extract_strided_slice %17 {offsets = [0, 32], sizes = [8, 32], strides = [1, 1]} : vector<8x128xf32> to vector<8x32xf32>
    %20 = vector.extract_strided_slice %17 {offsets = [0, 96], sizes = [8, 32], strides = [1, 1]} : vector<8x128xf32> to vector<8x32xf32>
    %21 = arith.mulf %18, %19 : vector<8x32xf32>
    %22 = math.tanh %21 : vector<8x32xf32>
    %23 = arith.mulf %22, %20 : vector<8x32xf32>
    %24 = vector.extract_strided_slice %0 {offsets = [0, 1], sizes = [8, 1], strides = [1, 1]} : vector<8x8xf32> to vector<8x1xf32>
    %25 = vector.shape_cast %24 : vector<8x1xf32> to vector<8xf32>
    %26 = vector.shape_cast %25 : vector<8xf32> to vector<8x1xf32>
    %27 = vector.broadcast %26 : vector<8x1xf32> to vector<8x128xf32>
    %28 = vector.broadcast %1 : vector<1x128xf32> to vector<8x128xf32>
    %29 = arith.mulf %27, %28 : vector<8x128xf32>
    %30 = vector.broadcast %3 : vector<1x128xf32> to vector<8x128xf32>
    %31 = arith.addf %29, %30 : vector<8x128xf32>
    %cst_7 = arith.constant dense<0.000000e+00> : vector<8x128xf32>
    %32 = tpu.matmul %23, %2, %cst_7 {dimension_numbers = #tpu.dot_dimension_numbers<[1], [0], [0], [1], [0, 0, 1, 1], [], []>} : vector<8x32xf32>, vector<32x128xf32>, vector<8x128xf32> -> vector<8x128xf32>
    %33 = arith.addf %31, %32 : vector<8x128xf32>
    %34 = math.tanh %33 : vector<8x128xf32>
    %35 = arith.negf %33 : vector<8x128xf32>
    %36 = math.exp %35 : vector<8x128xf32>
    %cst_8 = arith.constant 1.000000e+00 : f32
    %37 = vector.broadcast %cst_8 : f32 to vector<8x128xf32>
    %38 = arith.addf %37, %36 : vector<8x128xf32>
    %39 = arith.divf %37, %38 : vector<8x128xf32>
    %40 = vector.extract_strided_slice %34 {offsets = [0, 0], sizes = [8, 32], strides = [1, 1]} : vector<8x128xf32> to vector<8x32xf32>
    %41 = vector.extract_strided_slice %39 {offsets = [0, 32], sizes = [8, 32], strides = [1, 1]} : vector<8x128xf32> to vector<8x32xf32>
    %42 = vector.extract_strided_slice %39 {offsets = [0, 64], sizes = [8, 32], strides = [1, 1]} : vector<8x128xf32> to vector<8x32xf32>
    %43 = vector.extract_strided_slice %39 {offsets = [0, 96], sizes = [8, 32], strides = [1, 1]} : vector<8x128xf32> to vector<8x32xf32>
    %44 = arith.mulf %40, %41 : vector<8x32xf32>
    %45 = arith.mulf %21, %42 : vector<8x32xf32>
    %46 = arith.addf %44, %45 : vector<8x32xf32>
    %47 = math.tanh %46 : vector<8x32xf32>
    %48 = arith.mulf %47, %43 : vector<8x32xf32>
    %49 = vector.extract_strided_slice %0 {offsets = [0, 2], sizes = [8, 1], strides = [1, 1]} : vector<8x8xf32> to vector<8x1xf32>
    %50 = vector.shape_cast %49 : vector<8x1xf32> to vector<8xf32>
    %51 = vector.shape_cast %50 : vector<8xf32> to vector<8x1xf32>
    %52 = vector.broadcast %51 : vector<8x1xf32> to vector<8x128xf32>
    %53 = vector.broadcast %1 : vector<1x128xf32> to vector<8x128xf32>
    %54 = arith.mulf %52, %53 : vector<8x128xf32>
    %55 = vector.broadcast %3 : vector<1x128xf32> to vector<8x128xf32>
    %56 = arith.addf %54, %55 : vector<8x128xf32>
    %cst_9 = arith.constant dense<0.000000e+00> : vector<8x128xf32>
    %57 = tpu.matmul %48, %2, %cst_9 {dimension_numbers = #tpu.dot_dimension_numbers<[1], [0], [0], [1], [0, 0, 1, 1], [], []>} : vector<8x32xf32>, vector<32x128xf32>, vector<8x128xf32> -> vector<8x128xf32>
    %58 = arith.addf %56, %57 : vector<8x128xf32>
    %59 = math.tanh %58 : vector<8x128xf32>
    %60 = arith.negf %58 : vector<8x128xf32>
    %61 = math.exp %60 : vector<8x128xf32>
    %cst_10 = arith.constant 1.000000e+00 : f32
    %62 = vector.broadcast %cst_10 : f32 to vector<8x128xf32>
    %63 = arith.addf %62, %61 : vector<8x128xf32>
    %64 = arith.divf %62, %63 : vector<8x128xf32>
    %65 = vector.extract_strided_slice %59 {offsets = [0, 0], sizes = [8, 32], strides = [1, 1]} : vector<8x128xf32> to vector<8x32xf32>
    %66 = vector.extract_strided_slice %64 {offsets = [0, 32], sizes = [8, 32], strides = [1, 1]} : vector<8x128xf32> to vector<8x32xf32>
    %67 = vector.extract_strided_slice %64 {offsets = [0, 64], sizes = [8, 32], strides = [1, 1]} : vector<8x128xf32> to vector<8x32xf32>
    %68 = vector.extract_strided_slice %64 {offsets = [0, 96], sizes = [8, 32], strides = [1, 1]} : vector<8x128xf32> to vector<8x32xf32>
    %69 = arith.mulf %65, %66 : vector<8x32xf32>
    %70 = arith.mulf %46, %67 : vector<8x32xf32>
    %71 = arith.addf %69, %70 : vector<8x32xf32>
    %72 = math.tanh %71 : vector<8x32xf32>
    %73 = arith.mulf %72, %68 : vector<8x32xf32>
    %74 = vector.extract_strided_slice %0 {offsets = [0, 3], sizes = [8, 1], strides = [1, 1]} : vector<8x8xf32> to vector<8x1xf32>
    %75 = vector.shape_cast %74 : vector<8x1xf32> to vector<8xf32>
    %76 = vector.shape_cast %75 : vector<8xf32> to vector<8x1xf32>
    %77 = vector.broadcast %76 : vector<8x1xf32> to vector<8x128xf32>
    %78 = vector.broadcast %1 : vector<1x128xf32> to vector<8x128xf32>
    %79 = arith.mulf %77, %78 : vector<8x128xf32>
    %80 = vector.broadcast %3 : vector<1x128xf32> to vector<8x128xf32>
    %81 = arith.addf %79, %80 : vector<8x128xf32>
    %cst_11 = arith.constant dense<0.000000e+00> : vector<8x128xf32>
    %82 = tpu.matmul %73, %2, %cst_11 {dimension_numbers = #tpu.dot_dimension_numbers<[1], [0], [0], [1], [0, 0, 1, 1], [], []>} : vector<8x32xf32>, vector<32x128xf32>, vector<8x128xf32> -> vector<8x128xf32>
    %83 = arith.addf %81, %82 : vector<8x128xf32>
    %84 = math.tanh %83 : vector<8x128xf32>
    %85 = arith.negf %83 : vector<8x128xf32>
    %86 = math.exp %85 : vector<8x128xf32>
    %cst_12 = arith.constant 1.000000e+00 : f32
    %87 = vector.broadcast %cst_12 : f32 to vector<8x128xf32>
    %88 = arith.addf %87, %86 : vector<8x128xf32>
    %89 = arith.divf %87, %88 : vector<8x128xf32>
    %90 = vector.extract_strided_slice %84 {offsets = [0, 0], sizes = [8, 32], strides = [1, 1]} : vector<8x128xf32> to vector<8x32xf32>
    %91 = vector.extract_strided_slice %89 {offsets = [0, 32], sizes = [8, 32], strides = [1, 1]} : vector<8x128xf32> to vector<8x32xf32>
    %92 = vector.extract_strided_slice %89 {offsets = [0, 64], sizes = [8, 32], strides = [1, 1]} : vector<8x128xf32> to vector<8x32xf32>
    %93 = vector.extract_strided_slice %89 {offsets = [0, 96], sizes = [8, 32], strides = [1, 1]} : vector<8x128xf32> to vector<8x32xf32>
    %94 = arith.mulf %90, %91 : vector<8x32xf32>
    %95 = arith.mulf %71, %92 : vector<8x32xf32>
    %96 = arith.addf %94, %95 : vector<8x32xf32>
    %97 = math.tanh %96 : vector<8x32xf32>
    %98 = arith.mulf %97, %93 : vector<8x32xf32>
    %99 = vector.extract_strided_slice %0 {offsets = [0, 4], sizes = [8, 1], strides = [1, 1]} : vector<8x8xf32> to vector<8x1xf32>
    %100 = vector.shape_cast %99 : vector<8x1xf32> to vector<8xf32>
    %101 = vector.shape_cast %100 : vector<8xf32> to vector<8x1xf32>
    %102 = vector.broadcast %101 : vector<8x1xf32> to vector<8x128xf32>
    %103 = vector.broadcast %1 : vector<1x128xf32> to vector<8x128xf32>
    %104 = arith.mulf %102, %103 : vector<8x128xf32>
    %105 = vector.broadcast %3 : vector<1x128xf32> to vector<8x128xf32>
    %106 = arith.addf %104, %105 : vector<8x128xf32>
    %cst_13 = arith.constant dense<0.000000e+00> : vector<8x128xf32>
    %107 = tpu.matmul %98, %2, %cst_13 {dimension_numbers = #tpu.dot_dimension_numbers<[1], [0], [0], [1], [0, 0, 1, 1], [], []>} : vector<8x32xf32>, vector<32x128xf32>, vector<8x128xf32> -> vector<8x128xf32>
    %108 = arith.addf %106, %107 : vector<8x128xf32>
    %109 = math.tanh %108 : vector<8x128xf32>
    %110 = arith.negf %108 : vector<8x128xf32>
    %111 = math.exp %110 : vector<8x128xf32>
    %cst_14 = arith.constant 1.000000e+00 : f32
    %112 = vector.broadcast %cst_14 : f32 to vector<8x128xf32>
    %113 = arith.addf %112, %111 : vector<8x128xf32>
    %114 = arith.divf %112, %113 : vector<8x128xf32>
    %115 = vector.extract_strided_slice %109 {offsets = [0, 0], sizes = [8, 32], strides = [1, 1]} : vector<8x128xf32> to vector<8x32xf32>
    %116 = vector.extract_strided_slice %114 {offsets = [0, 32], sizes = [8, 32], strides = [1, 1]} : vector<8x128xf32> to vector<8x32xf32>
    %117 = vector.extract_strided_slice %114 {offsets = [0, 64], sizes = [8, 32], strides = [1, 1]} : vector<8x128xf32> to vector<8x32xf32>
    %118 = vector.extract_strided_slice %114 {offsets = [0, 96], sizes = [8, 32], strides = [1, 1]} : vector<8x128xf32> to vector<8x32xf32>
    %119 = arith.mulf %115, %116 : vector<8x32xf32>
    %120 = arith.mulf %96, %117 : vector<8x32xf32>
    %121 = arith.addf %119, %120 : vector<8x32xf32>
    %122 = math.tanh %121 : vector<8x32xf32>
    %123 = arith.mulf %122, %118 : vector<8x32xf32>
    %124 = vector.extract_strided_slice %0 {offsets = [0, 5], sizes = [8, 1], strides = [1, 1]} : vector<8x8xf32> to vector<8x1xf32>
    %125 = vector.shape_cast %124 : vector<8x1xf32> to vector<8xf32>
    %126 = vector.shape_cast %125 : vector<8xf32> to vector<8x1xf32>
    %127 = vector.broadcast %126 : vector<8x1xf32> to vector<8x128xf32>
    %128 = vector.broadcast %1 : vector<1x128xf32> to vector<8x128xf32>
    %129 = arith.mulf %127, %128 : vector<8x128xf32>
    %130 = vector.broadcast %3 : vector<1x128xf32> to vector<8x128xf32>
    %131 = arith.addf %129, %130 : vector<8x128xf32>
    %cst_15 = arith.constant dense<0.000000e+00> : vector<8x128xf32>
    %132 = tpu.matmul %123, %2, %cst_15 {dimension_numbers = #tpu.dot_dimension_numbers<[1], [0], [0], [1], [0, 0, 1, 1], [], []>} : vector<8x32xf32>, vector<32x128xf32>, vector<8x128xf32> -> vector<8x128xf32>
    %133 = arith.addf %131, %132 : vector<8x128xf32>
    %134 = math.tanh %133 : vector<8x128xf32>
    %135 = arith.negf %133 : vector<8x128xf32>
    %136 = math.exp %135 : vector<8x128xf32>
    %cst_16 = arith.constant 1.000000e+00 : f32
    %137 = vector.broadcast %cst_16 : f32 to vector<8x128xf32>
    %138 = arith.addf %137, %136 : vector<8x128xf32>
    %139 = arith.divf %137, %138 : vector<8x128xf32>
    %140 = vector.extract_strided_slice %134 {offsets = [0, 0], sizes = [8, 32], strides = [1, 1]} : vector<8x128xf32> to vector<8x32xf32>
    %141 = vector.extract_strided_slice %139 {offsets = [0, 32], sizes = [8, 32], strides = [1, 1]} : vector<8x128xf32> to vector<8x32xf32>
    %142 = vector.extract_strided_slice %139 {offsets = [0, 64], sizes = [8, 32], strides = [1, 1]} : vector<8x128xf32> to vector<8x32xf32>
    %143 = vector.extract_strided_slice %139 {offsets = [0, 96], sizes = [8, 32], strides = [1, 1]} : vector<8x128xf32> to vector<8x32xf32>
    %144 = arith.mulf %140, %141 : vector<8x32xf32>
    %145 = arith.mulf %121, %142 : vector<8x32xf32>
    %146 = arith.addf %144, %145 : vector<8x32xf32>
    %147 = math.tanh %146 : vector<8x32xf32>
    %148 = arith.mulf %147, %143 : vector<8x32xf32>
    %149 = vector.extract_strided_slice %0 {offsets = [0, 6], sizes = [8, 1], strides = [1, 1]} : vector<8x8xf32> to vector<8x1xf32>
    %150 = vector.shape_cast %149 : vector<8x1xf32> to vector<8xf32>
    %151 = vector.shape_cast %150 : vector<8xf32> to vector<8x1xf32>
    %152 = vector.broadcast %151 : vector<8x1xf32> to vector<8x128xf32>
    %153 = vector.broadcast %1 : vector<1x128xf32> to vector<8x128xf32>
    %154 = arith.mulf %152, %153 : vector<8x128xf32>
    %155 = vector.broadcast %3 : vector<1x128xf32> to vector<8x128xf32>
    %156 = arith.addf %154, %155 : vector<8x128xf32>
    %cst_17 = arith.constant dense<0.000000e+00> : vector<8x128xf32>
    %157 = tpu.matmul %148, %2, %cst_17 {dimension_numbers = #tpu.dot_dimension_numbers<[1], [0], [0], [1], [0, 0, 1, 1], [], []>} : vector<8x32xf32>, vector<32x128xf32>, vector<8x128xf32> -> vector<8x128xf32>
    %158 = arith.addf %156, %157 : vector<8x128xf32>
    %159 = math.tanh %158 : vector<8x128xf32>
    %160 = arith.negf %158 : vector<8x128xf32>
    %161 = math.exp %160 : vector<8x128xf32>
    %cst_18 = arith.constant 1.000000e+00 : f32
    %162 = vector.broadcast %cst_18 : f32 to vector<8x128xf32>
    %163 = arith.addf %162, %161 : vector<8x128xf32>
    %164 = arith.divf %162, %163 : vector<8x128xf32>
    %165 = vector.extract_strided_slice %159 {offsets = [0, 0], sizes = [8, 32], strides = [1, 1]} : vector<8x128xf32> to vector<8x32xf32>
    %166 = vector.extract_strided_slice %164 {offsets = [0, 32], sizes = [8, 32], strides = [1, 1]} : vector<8x128xf32> to vector<8x32xf32>
    %167 = vector.extract_strided_slice %164 {offsets = [0, 64], sizes = [8, 32], strides = [1, 1]} : vector<8x128xf32> to vector<8x32xf32>
    %168 = vector.extract_strided_slice %164 {offsets = [0, 96], sizes = [8, 32], strides = [1, 1]} : vector<8x128xf32> to vector<8x32xf32>
    %169 = arith.mulf %165, %166 : vector<8x32xf32>
    %170 = arith.mulf %146, %167 : vector<8x32xf32>
    %171 = arith.addf %169, %170 : vector<8x32xf32>
    %172 = math.tanh %171 : vector<8x32xf32>
    %173 = arith.mulf %172, %168 : vector<8x32xf32>
    %174 = vector.extract_strided_slice %0 {offsets = [0, 7], sizes = [8, 1], strides = [1, 1]} : vector<8x8xf32> to vector<8x1xf32>
    %175 = vector.shape_cast %174 : vector<8x1xf32> to vector<8xf32>
    %176 = vector.shape_cast %175 : vector<8xf32> to vector<8x1xf32>
    %177 = vector.broadcast %176 : vector<8x1xf32> to vector<8x128xf32>
    %178 = vector.broadcast %1 : vector<1x128xf32> to vector<8x128xf32>
    %179 = arith.mulf %177, %178 : vector<8x128xf32>
    %180 = vector.broadcast %3 : vector<1x128xf32> to vector<8x128xf32>
    %181 = arith.addf %179, %180 : vector<8x128xf32>
    %cst_19 = arith.constant dense<0.000000e+00> : vector<8x128xf32>
    %182 = tpu.matmul %173, %2, %cst_19 {dimension_numbers = #tpu.dot_dimension_numbers<[1], [0], [0], [1], [0, 0, 1, 1], [], []>} : vector<8x32xf32>, vector<32x128xf32>, vector<8x128xf32> -> vector<8x128xf32>
    %183 = arith.addf %181, %182 : vector<8x128xf32>
    %184 = math.tanh %183 : vector<8x128xf32>
    %185 = arith.negf %183 : vector<8x128xf32>
    %186 = math.exp %185 : vector<8x128xf32>
    %cst_20 = arith.constant 1.000000e+00 : f32
    %187 = vector.broadcast %cst_20 : f32 to vector<8x128xf32>
    %188 = arith.addf %187, %186 : vector<8x128xf32>
    %189 = arith.divf %187, %188 : vector<8x128xf32>
    %190 = vector.extract_strided_slice %184 {offsets = [0, 0], sizes = [8, 32], strides = [1, 1]} : vector<8x128xf32> to vector<8x32xf32>
    %191 = vector.extract_strided_slice %189 {offsets = [0, 32], sizes = [8, 32], strides = [1, 1]} : vector<8x128xf32> to vector<8x32xf32>
    %192 = vector.extract_strided_slice %189 {offsets = [0, 64], sizes = [8, 32], strides = [1, 1]} : vector<8x128xf32> to vector<8x32xf32>
    %193 = vector.extract_strided_slice %189 {offsets = [0, 96], sizes = [8, 32], strides = [1, 1]} : vector<8x128xf32> to vector<8x32xf32>
    %194 = arith.mulf %190, %191 : vector<8x32xf32>
    %195 = arith.mulf %171, %192 : vector<8x32xf32>
    %196 = arith.addf %194, %195 : vector<8x32xf32>
    %197 = math.tanh %196 : vector<8x32xf32>
    %198 = arith.mulf %197, %193 : vector<8x32xf32>
    %c0_21 = arith.constant 0 : index
    %c0_22 = arith.constant 0 : index
    %199 = vector.load %arg5[%c0_21, %c0_22] : memref<32x128xf32, #tpu.memory_space<vmem>>, vector<32x128xf32>
    %cst_23 = arith.constant dense<0.000000e+00> : vector<8x128xf32>
    %200 = tpu.matmul %198, %199, %cst_23 {dimension_numbers = #tpu.dot_dimension_numbers<[1], [0], [0], [1], [0, 0, 1, 1], [], []>} : vector<8x32xf32>, vector<32x128xf32>, vector<8x128xf32> -> vector<8x128xf32>
    %c0_24 = arith.constant 0 : index
    %c0_25 = arith.constant 0 : index
    %201 = vector.load %arg6[%c0_24, %c0_25] : memref<1x128xf32, #tpu.memory_space<vmem>>, vector<1x128xf32>
    %202 = vector.broadcast %201 : vector<1x128xf32> to vector<8x128xf32>
    %203 = arith.addf %200, %202 : vector<8x128xf32>
    %cst_26 = arith.constant dense<0xFF800000> : vector<8xf32>
    %204 = vector.multi_reduction <maximumf>, %203, %cst_26 [1] : vector<8x128xf32> to vector<8xf32>
    %205 = vector.shape_cast %204 : vector<8xf32> to vector<8x1xf32>
    %206 = vector.broadcast %205 : vector<8x1xf32> to vector<8x128xf32>
    %207 = arith.subf %203, %206 : vector<8x128xf32>
    %208 = math.exp %207 : vector<8x128xf32>
    %cst_27 = arith.constant dense<0.000000e+00> : vector<8xf32>
    %209 = vector.multi_reduction <add>, %208, %cst_27 [1] : vector<8x128xf32> to vector<8xf32>
    %210 = vector.shape_cast %209 : vector<8xf32> to vector<8x1xf32>
    %211 = vector.broadcast %210 : vector<8x1xf32> to vector<8x128xf32>
    %212 = arith.divf %208, %211 : vector<8x128xf32>
    %c0_28 = arith.constant 0 : index
    %c0_29 = arith.constant 0 : index
    %213 = vector.load %arg7[%c0_28, %c0_29] : memref<8x128xf32, #tpu.memory_space<vmem>>, vector<8x128xf32>
    tpu.vector_store %arg7[%c0_28, %c0_29], %212 {strides = array<i32>} : memref<8x128xf32, #tpu.memory_space<vmem>>, vector<8x128xf32>,
    return
  }
  func.func @transform_0(%arg0: i32) -> (i32, i32) {
    %c0_i32 = arith.constant 0 : i32
    %c0_i32_0 = arith.constant 0 : i32
    return %arg0, %c0_i32 : i32, i32
  }
  func.func @transform_1(%arg0: i32) -> (i32, i32) {
    %c0_i32 = arith.constant 0 : i32
    %c0_i32_0 = arith.constant 0 : i32
    %c0_i32_1 = arith.constant 0 : i32
    return %c0_i32, %c0_i32_0 : i32, i32
  }
  func.func @transform_2(%arg0: i32) -> (i32, i32) {
    %c0_i32 = arith.constant 0 : i32
    %c0_i32_0 = arith.constant 0 : i32
    %c0_i32_1 = arith.constant 0 : i32
    return %c0_i32, %c0_i32_0 : i32, i32
  }
  func.func @transform_3(%arg0: i32) -> (i32, i32) {
    %c0_i32 = arith.constant 0 : i32
    %c0_i32_0 = arith.constant 0 : i32
    %c0_i32_1 = arith.constant 0 : i32
    return %c0_i32, %c0_i32_0 : i32, i32
  }
  func.func @transform_4(%arg0: i32) -> (i32, i32) {
    %c0_i32 = arith.constant 0 : i32
    %c0_i32_0 = arith.constant 0 : i32
    %c0_i32_1 = arith.constant 0 : i32
    return %c0_i32, %c0_i32_0 : i32, i32
  }
  func.func @transform_5(%arg0: i32) -> (i32, i32) {
    %c0_i32 = arith.constant 0 : i32
    %c0_i32_0 = arith.constant 0 : i32
    %c0_i32_1 = arith.constant 0 : i32
    return %c0_i32, %c0_i32_0 : i32, i32
  }
  func.func @transform_6(%arg0: i32) -> (i32, i32) {
    %c0_i32 = arith.constant 0 : i32
    %c0_i32_0 = arith.constant 0 : i32
    return %arg0, %c0_i32 : i32, i32
  }
}

</mosaic_0001>

<llo_original>
// kernel: lstm_forward.1
$region0: #{lstm_forward.1}
  #allocation0 [shape = 'u32[]', space=smem, size = 0x4, offset = 0x4, fixed_abs, tag = 'smem constant byte address 0x4 - core index']
  #allocation1 [shape = 'u32[72,128]{1,0:T(1,128)}', space=vmem, size = 0x9000, scoped, tag = 'internal scratch']
  %s0 = inlined_call_operand.vmem [shape: f32[8,8], index: 0, kind: input, shape index: {}]
  %s1 = inlined_call_operand.vmem [shape: f32[1,128], index: 1, kind: input, shape index: {}]
  %s2 = inlined_call_operand.vmem [shape: f32[32,128], index: 2, kind: input, shape index: {}]
  %s3 = inlined_call_operand.vmem [shape: f32[1,128], index: 3, kind: input, shape index: {}]
  %s4 = inlined_call_operand.vmem [shape: f32[32,128], index: 4, kind: input, shape index: {}]
  %s5 = inlined_call_operand.vmem [shape: f32[1,128], index: 5, kind: input, shape index: {}]
  %s6 = inlined_call_operand.vmem [shape: f32[8,128], index: 6, kind: output, shape index: {}]
  %s7 = sld [smem:[#allocation0]]
  $region34: #{lstm_forward.1} parent=0
    _
  %s9 = ssub.s32 1, %s7
  %s10 = scalar_select 0, %s9, %s7
  // Predicated region
  $region2: #{lstm_forward.1} parent=0 // pred_check
    _
  $region3: #{lstm_forward.1} parent=0 // pred_check_branch
    %12 = sbr.rel (0) target = $region5
  $region4: #{lstm_forward.1} parent=0 // pred_region
    _
  $region5: #{lstm_forward.1} parent=0 // pred_fallthru
    _
  // Predicated region
  $region6: #{lstm_forward.1} parent=0 // pred_check
    _
  $region7: #{lstm_forward.1} parent=0 // pred_check_branch
    %14 = sbr.rel (0) target = $region9
  $region8: #{lstm_forward.1} parent=0 // pred_region
    _
  $region9: #{lstm_forward.1} parent=0 // pred_fallthru
    _
  // Predicated region
  $region10: #{lstm_forward.1} parent=0 // pred_check
    _
  $region11: #{lstm_forward.1} parent=0 // pred_check_branch
    %16 = sbr.rel (0) target = $region13
  $region12: #{lstm_forward.1} parent=0 // pred_region
    _
  $region13: #{lstm_forward.1} parent=0 // pred_fallthru
    _
  // Predicated region
  $region14: #{lstm_forward.1} parent=0 // pred_check
    _
  $region15: #{lstm_forward.1} parent=0 // pred_check_branch
    %18 = sbr.rel (0) target = $region17
  $region16: #{lstm_forward.1} parent=0 // pred_region
    _
  $region17: #{lstm_forward.1} parent=0 // pred_fallthru
    _
  // Predicated region
  $region18: #{lstm_forward.1} parent=0 // pred_check
    _
  $region19: #{lstm_forward.1} parent=0 // pred_check_branch
    %20 = sbr.rel (0) target = $region21
  $region20: #{lstm_forward.1} parent=0 // pred_region
    _
  $region21: #{lstm_forward.1} parent=0 // pred_fallthru
    _
  // Predicated region
  $region22: #{lstm_forward.1} parent=0 // pred_check
    _
  $region23: #{lstm_forward.1} parent=0 // pred_check_branch
    %22 = sbr.rel (0) target = $region25
  $region24: #{lstm_forward.1} parent=0 // pred_region
    _
  $region25: #{lstm_forward.1} parent=0 // pred_fallthru
    _
  %v23 = vld [vmem:[%s0] sm:$0xff]
  %v24 = vld [vmem:[%s1] sm:$0x1]
  %v25 = vld [vmem:[%s2] sm:$0xff]
  %v26 = vld [vmem:[%s2 + $0x8] sm:$0xff]
  %v27 = vld [vmem:[%s2 + $0x10] sm:$0xff]
  %v28 = vld [vmem:[%s2 + $0x18] sm:$0xff]
  %v29 = vld [vmem:[%s3] sm:$0x1]
  %31 = vset.pattern.permute.xlu0 0
  %32 = vperm.xlu0 %31, %v23
  %v33 = vpop.permute.xlu0 %32
  %v36 = vperm.slane %v24, 0
  %v38 = vmul.f32 %v33, %v36
  %v40 = vperm.slane %v29, 0
  %v42 = vadd.f32 %v38, %v40
  %v43 = vtanh.pop %v42
  %v44 = vxor.u32 %v42, 2147483648
  %v45 = vmul.f32 %v44, 1.442695
  %v46 = vpow.pop %v45
  %v47 = vadd.f32 %v46, 1.0
  %v48 = vrcp.pop %v47
  %v49 = vmul.f32 %v47, %v48
  %v50 = vsub.f32 1.0, %v49
  %v51 = vmul.f32 %v48, %v50
  %v52 = vadd.f32 %v48, %v51
  %vm53 = vweird.f32 %v47
  %vm54 = vweird.f32 %v48
  %vm55 = vmor %vm53, %vm54
  %v56 = vsel %vm55, %v48, %v52
  %v57 = vand.u32 2147483647, %v47
  %vm58 = vcmp.eq.f32.partialorder %v57, 8.507059e+37
  %v59 = vand.u32 %v47, 2147483648
  %v60 = vor.u32 1.1754944e-38, %v59
  %v61 = vsel %vm58, %v60, %v56
  %v62 = vmul.f32 1.0, %v61
  %64 = vrot.lane.b32.xlu0 %v62, 96
  %v65 = vpop.permute.xlu0 %64
  %v67 = vmul.f32 %v43, %v65
  %v68 = vtanh.pop %v67
  %69 = vrot.lane.b32.xlu0 %v62, 32
  %v70 = vpop.permute.xlu0 %69
  %v72 = vmul.f32 %v68, %v70
  %73 = vset.pattern.permute.xlu0 1
  %74 = vperm.xlu0 %73, %v23
  %v75 = vpop.permute.xlu0 %74
  %v77 = vmul.f32 %v75, %v36
  %v78 = vadd.f32 %v77, %v40
  %vm79 = vcmask 261120
  %v81 = vsel %vm79, %v72, 0
  %83 = vmatpush.msra.mxu0 0.0
  %84 = vmatpush.msra.mxu0 0.0
  %85 = vmatpush.msra.mxu0 0.0
  %86 = vmatpush.msra.mxu0 0.0
  %87 = vmatpush.msra.mxu0 0.0
  %88 = vmatpush.msra.mxu0 0.0
  %89 = vmatpush.msra.mxu0 0.0
  %90 = vmatpush.msra.mxu0 0.0
  %91 = vmatpush.msra.mxu0 0.0
  %92 = vmatpush.msra.mxu0 0.0
  %93 = vmatpush.msra.mxu0 0.0
  %94 = vmatpush.msra.mxu0 0.0
  %95 = vmatpush.msra.mxu0 %v28
  %96 = vmatpush.msra.mxu0 %v27
  %97 = vmatpush.msra.mxu0 %v26
  %98 = vmatpush.msra.mxu0 %v25
  %99 = vmatmul.f32.gmra.mxu0 %v81
  %v100 = vpop.f32.mrf.mxu0
  %v101 = vadd.f32 0.0, %v100
  %102 = vdwg.mxu0
  %v103 = vadd.f32 %v78, %v101
  %v104 = vtanh.pop %v103
  %v105 = vxor.u32 %v103, 2147483648
  %v106 = vmul.f32 %v105, 1.442695
  %v107 = vpow.pop %v106
  %v108 = vadd.f32 %v107, 1.0
  %v109 = vrcp.pop %v108
  %v110 = vmul.f32 %v108, %v109
  %v111 = vsub.f32 1.0, %v110
  %v112 = vmul.f32 %v109, %v111
  %v113 = vadd.f32 %v109, %v112
  %vm114 = vweird.f32 %v108
  %vm115 = vweird.f32 %v109
  %vm116 = vmor %vm114, %vm115
  %v117 = vsel %vm116, %v109, %v113
  %v118 = vand.u32 2147483647, %v108
  %vm119 = vcmp.eq.f32.partialorder %v118, 8.507059e+37
  %v120 = vand.u32 %v108, 2147483648
  %v121 = vor.u32 1.1754944e-38, %v120
  %v122 = vsel %vm119, %v121, %v117
  %v123 = vmul.f32 1.0, %v122
  %125 = vrot.lane.b32.xlu0 %v123, 96
  %v126 = vpop.permute.xlu0 %125
  %v128 = vmul.f32 %v104, %v126
  %129 = vrot.lane.b32.xlu0 %v123, 64
  %v130 = vpop.permute.xlu0 %129
  %v132 = vmul.f32 %v67, %v130
  %v133 = vadd.f32 %v128, %v132
  %v134 = vtanh.pop %v133
  %135 = vrot.lane.b32.xlu0 %v123, 32
  %v136 = vpop.permute.xlu0 %135
  %v138 = vmul.f32 %v134, %v136
  %139 = vset.pattern.permute.xlu0 2
  %140 = vperm.xlu0 %139, %v23
  %v141 = vpop.permute.xlu0 %140
  %v143 = vmul.f32 %v141, %v36
  %v144 = vadd.f32 %v143, %v40
  %v146 = vsel %vm79, %v138, 0
  %148 = vmatpush.msra.mxu0 0.0
  %149 = vmatpush.msra.mxu0 0.0
  %150 = vmatpush.msra.mxu0 0.0
  %151 = vmatpush.msra.mxu0 0.0
  %152 = vmatpush.msra.mxu0 0.0
  %153 = vmatpush.msra.mxu0 0.0
  %154 = vmatpush.msra.mxu0 0.0
  %155 = vmatpush.msra.mxu0 0.0
  %156 = vmatpush.msra.mxu0 0.0
  %157 = vmatpush.msra.mxu0 0.0
  %158 = vmatpush.msra.mxu0 0.0
  %159 = vmatpush.msra.mxu0 0.0
  %160 = vmatpush.msra.mxu0 %v28
  %161 = vmatpush.msra.mxu0 %v27
  %162 = vmatpush.msra.mxu0 %v26
  %163 = vmatpush.msra.mxu0 %v25
  %164 = vmatmul.f32.gmra.mxu0 %v146
  %v165 = vpop.f32.mrf.mxu0
  %v166 = vadd.f32 0.0, %v165
  %167 = vdwg.mxu0
  %v168 = vadd.f32 %v144, %v166
  %v169 = vtanh.pop %v168
  %v170 = vxor.u32 %v168, 2147483648
  %v171 = vmul.f32 %v170, 1.442695
  %v172 = vpow.pop %v171
  %v173 = vadd.f32 %v172, 1.0
  %v174 = vrcp.pop %v173
  %v175 = vmul.f32 %v173, %v174
  %v176 = vsub.f32 1.0, %v175
  %v177 = vmul.f32 %v174, %v176
  %v178 = vadd.f32 %v174, %v177
  %vm179 = vweird.f32 %v173
  %vm180 = vweird.f32 %v174
  %vm181 = vmor %vm179, %vm180
  %v182 = vsel %vm181, %v174, %v178
  %v183 = vand.u32 2147483647, %v173
  %vm184 = vcmp.eq.f32.partialorder %v183, 8.507059e+37
  %v185 = vand.u32 %v173, 2147483648
  %v186 = vor.u32 1.1754944e-38, %v185
  %v187 = vsel %vm184, %v186, %v182
  %v188 = vmul.f32 1.0, %v187
  %190 = vrot.lane.b32.xlu0 %v188, 96
  %v191 = vpop.permute.xlu0 %190
  %v193 = vmul.f32 %v169, %v191
  %194 = vrot.lane.b32.xlu0 %v188, 64
  %v195 = vpop.permute.xlu0 %194
  %v197 = vmul.f32 %v133, %v195
  %v198 = vadd.f32 %v193, %v197
  %v199 = vtanh.pop %v198
  %200 = vrot.lane.b32.xlu0 %v188, 32
  %v201 = vpop.permute.xlu0 %200
  %v203 = vmul.f32 %v199, %v201
  %204 = vset.pattern.permute.xlu0 3
  %205 = vperm.xlu0 %204, %v23
  %v206 = vpop.permute.xlu0 %205
  %v208 = vmul.f32 %v206, %v36
  %v209 = vadd.f32 %v208, %v40
  %v211 = vsel %vm79, %v203, 0
  %213 = vmatpush.msra.mxu0 0.0
  %214 = vmatpush.msra.mxu0 0.0
  %215 = vmatpush.msra.mxu0 0.0
  %216 = vmatpush.msra.mxu0 0.0
  %217 = vmatpush.msra.mxu0 0.0
  %218 = vmatpush.msra.mxu0 0.0
  %219 = vmatpush.msra.mxu0 0.0
  %220 = vmatpush.msra.mxu0 0.0
  %221 = vmatpush.msra.mxu0 0.0
  %222 = vmatpush.msra.mxu0 0.0
  %223 = vmatpush.msra.mxu0 0.0
  %224 = vmatpush.msra.mxu0 0.0
  %225 = vmatpush.msra.mxu0 %v28
  %226 = vmatpush.msra.mxu0 %v27
  %227 = vmatpush.msra.mxu0 %v26
  %228 = vmatpush.msra.mxu0 %v25
  %229 = vmatmul.f32.gmra.mxu0 %v211
  %v230 = vpop.f32.mrf.mxu0
  %v231 = vadd.f32 0.0, %v230
  %232 = vdwg.mxu0
  %v233 = vadd.f32 %v209, %v231
  %v234 = vtanh.pop %v233
  %v235 = vxor.u32 %v233, 2147483648
  %v236 = vmul.f32 %v235, 1.442695
  %v237 = vpow.pop %v236
  %v238 = vadd.f32 %v237, 1.0
  %v239 = vrcp.pop %v238
  %v240 = vmul.f32 %v238, %v239
  %v241 = vsub.f32 1.0, %v240
  %v242 = vmul.f32 %v239, %v241
  %v243 = vadd.f32 %v239, %v242
  %vm244 = vweird.f32 %v238
  %vm245 = vweird.f32 %v239
  %vm246 = vmor %vm244, %vm245
  %v247 = vsel %vm246, %v239, %v243
  %v248 = vand.u32 2147483647, %v238
  %vm249 = vcmp.eq.f32.partialorder %v248, 8.507059e+37
  %v250 = vand.u32 %v238, 2147483648
  %v251 = vor.u32 1.1754944e-38, %v250
  %v252 = vsel %vm249, %v251, %v247
  %v253 = vmul.f32 1.0, %v252
  %255 = vrot.lane.b32.xlu0 %v253, 96
  %v256 = vpop.permute.xlu0 %255
  %v258 = vmul.f32 %v234, %v256
  %259 = vrot.lane.b32.xlu0 %v253, 64
  %v260 = vpop.permute.xlu0 %259
  %v262 = vmul.f32 %v198, %v260
  %v263 = vadd.f32 %v258, %v262
  %v264 = vtanh.pop %v263
  %265 = vrot.lane.b32.xlu0 %v253, 32
  %v266 = vpop.permute.xlu0 %265
  %v268 = vmul.f32 %v264, %v266
  %269 = vset.pattern.permute.xlu0 4
  %270 = vperm.xlu0 %269, %v23
  %v271 = vpop.permute.xlu0 %270
  %v273 = vmul.f32 %v271, %v36
  %v274 = vadd.f32 %v273, %v40
  %v276 = vsel %vm79, %v268, 0
  %278 = vmatpush.msra.mxu0 0.0
  %279 = vmatpush.msra.mxu0 0.0
  %280 = vmatpush.msra.mxu0 0.0
  %281 = vmatpush.msra.mxu0 0.0
  %282 = vmatpush.msra.mxu0 0.0
  %283 = vmatpush.msra.mxu0 0.0
  %284 = vmatpush.msra.mxu0 0.0
  %285 = vmatpush.msra.mxu0 0.0
  %286 = vmatpush.msra.mxu0 0.0
  %287 = vmatpush.msra.mxu0 0.0
  %288 = vmatpush.msra.mxu0 0.0
  %289 = vmatpush.msra.mxu0 0.0
  %290 = vmatpush.msra.mxu0 %v28
  %291 = vmatpush.msra.mxu0 %v27
  %292 = vmatpush.msra.mxu0 %v26
  %293 = vmatpush.msra.mxu0 %v25
  %294 = vmatmul.f32.gmra.mxu0 %v276
  %v295 = vpop.f32.mrf.mxu0
  %v296 = vadd.f32 0.0, %v295
  %297 = vdwg.mxu0
  %v298 = vadd.f32 %v274, %v296
  %v299 = vtanh.pop %v298
  %v300 = vxor.u32 %v298, 2147483648
  %v301 = vmul.f32 %v300, 1.442695
  %v302 = vpow.pop %v301
  %v303 = vadd.f32 %v302, 1.0
  %v304 = vrcp.pop %v303
  %v305 = vmul.f32 %v303, %v304
  %v306 = vsub.f32 1.0, %v305
  %v307 = vmul.f32 %v304, %v306
  %v308 = vadd.f32 %v304, %v307
  %vm309 = vweird.f32 %v303
  %vm310 = vweird.f32 %v304
  %vm311 = vmor %vm309, %vm310
  %v312 = vsel %vm311, %v304, %v308
  %v313 = vand.u32 2147483647, %v303
  %vm314 = vcmp.eq.f32.partialorder %v313, 8.507059e+37
  %v315 = vand.u32 %v303, 2147483648
  %v316 = vor.u32 1.1754944e-38, %v315
  %v317 = vsel %vm314, %v316, %v312
  %v318 = vmul.f32 1.0, %v317
  %320 = vrot.lane.b32.xlu0 %v318, 96
  %v321 = vpop.permute.xlu0 %320
  %v323 = vmul.f32 %v299, %v321
  %324 = vrot.lane.b32.xlu0 %v318, 64
  %v325 = vpop.permute.xlu0 %324
  %v327 = vmul.f32 %v263, %v325
  %v328 = vadd.f32 %v323, %v327
  %v329 = vtanh.pop %v328
  %330 = vrot.lane.b32.xlu0 %v318, 32
  %v331 = vpop.permute.xlu0 %330
  %v333 = vmul.f32 %v329, %v331
  %334 = vset.pattern.permute.xlu0 5
  %335 = vperm.xlu0 %334, %v23
  %v336 = vpop.permute.xlu0 %335
  %v338 = vmul.f32 %v336, %v36
  %v339 = vadd.f32 %v338, %v40
  %v341 = vsel %vm79, %v333, 0
  %343 = vmatpush.msra.mxu0 0.0
  %344 = vmatpush.msra.mxu0 0.0
  %345 = vmatpush.msra.mxu0 0.0
  %346 = vmatpush.msra.mxu0 0.0
  %347 = vmatpush.msra.mxu0 0.0
  %348 = vmatpush.msra.mxu0 0.0
  %349 = vmatpush.msra.mxu0 0.0
  %350 = vmatpush.msra.mxu0 0.0
  %351 = vmatpush.msra.mxu0 0.0
  %352 = vmatpush.msra.mxu0 0.0
  %353 = vmatpush.msra.mxu0 0.0
  %354 = vmatpush.msra.mxu0 0.0
  %355 = vmatpush.msra.mxu0 %v28
  %356 = vmatpush.msra.mxu0 %v27
  %357 = vmatpush.msra.mxu0 %v26
  %358 = vmatpush.msra.mxu0 %v25
  %359 = vmatmul.f32.gmra.mxu0 %v341
  %v360 = vpop.f32.mrf.mxu0
  %v361 = vadd.f32 0.0, %v360
  %362 = vdwg.mxu0
  %v363 = vadd.f32 %v339, %v361
  %v364 = vtanh.pop %v363
  %v365 = vxor.u32 %v363, 2147483648
  %v366 = vmul.f32 %v365, 1.442695
  %v367 = vpow.pop %v366
  %v368 = vadd.f32 %v367, 1.0
  %v369 = vrcp.pop %v368
  %v370 = vmul.f32 %v368, %v369
  %v371 = vsub.f32 1.0, %v370
  %v372 = vmul.f32 %v369, %v371
  %v373 = vadd.f32 %v369, %v372
  %vm374 = vweird.f32 %v368
  %vm375 = vweird.f32 %v369
  %vm376 = vmor %vm374, %vm375
  %v377 = vsel %vm376, %v369, %v373
  %v378 = vand.u32 2147483647, %v368
  %vm379 = vcmp.eq.f32.partialorder %v378, 8.507059e+37
  %v380 = vand.u32 %v368, 2147483648
  %v381 = vor.u32 1.1754944e-38, %v380
  %v382 = vsel %vm379, %v381, %v377
  %v383 = vmul.f32 1.0, %v382
  %385 = vrot.lane.b32.xlu0 %v383, 96
  %v386 = vpop.permute.xlu0 %385
  %v388 = vmul.f32 %v364, %v386
  %389 = vrot.lane.b32.xlu0 %v383, 64
  %v390 = vpop.permute.xlu0 %389
  %v392 = vmul.f32 %v328, %v390
  %v393 = vadd.f32 %v388, %v392
  %v394 = vtanh.pop %v393
  %395 = vrot.lane.b32.xlu0 %v383, 32
  %v396 = vpop.permute.xlu0 %395
  %v398 = vmul.f32 %v394, %v396
  %399 = vset.pattern.permute.xlu0 6
  %400 = vperm.xlu0 %399, %v23
  %v401 = vpop.permute.xlu0 %400
  %v403 = vmul.f32 %v401, %v36
  %v404 = vadd.f32 %v403, %v40
  %v406 = vsel %vm79, %v398, 0
  %408 = vmatpush.msra.mxu0 0.0
  %409 = vmatpush.msra.mxu0 0.0
  %410 = vmatpush.msra.mxu0 0.0
  %411 = vmatpush.msra.mxu0 0.0
  %412 = vmatpush.msra.mxu0 0.0
  %413 = vmatpush.msra.mxu0 0.0
  %414 = vmatpush.msra.mxu0 0.0
  %415 = vmatpush.msra.mxu0 0.0
  %416 = vmatpush.msra.mxu0 0.0
  %417 = vmatpush.msra.mxu0 0.0
  %418 = vmatpush.msra.mxu0 0.0
  %419 = vmatpush.msra.mxu0 0.0
  %420 = vmatpush.msra.mxu0 %v28
  %421 = vmatpush.msra.mxu0 %v27
  %422 = vmatpush.msra.mxu0 %v26
  %423 = vmatpush.msra.mxu0 %v25
  %424 = vmatmul.f32.gmra.mxu0 %v406
  %v425 = vpop.f32.mrf.mxu0
  %v426 = vadd.f32 0.0, %v425
  %427 = vdwg.mxu0
  %v428 = vadd.f32 %v404, %v426
  %v429 = vtanh.pop %v428
  %v430 = vxor.u32 %v428, 2147483648
  %v431 = vmul.f32 %v430, 1.442695
  %v432 = vpow.pop %v431
  %v433 = vadd.f32 %v432, 1.0
  %v434 = vrcp.pop %v433
  %v435 = vmul.f32 %v433, %v434
  %v436 = vsub.f32 1.0, %v435
  %v437 = vmul.f32 %v434, %v436
  %v438 = vadd.f32 %v434, %v437
  %vm439 = vweird.f32 %v433
  %vm440 = vweird.f32 %v434
  %vm441 = vmor %vm439, %vm440
  %v442 = vsel %vm441, %v434, %v438
  %v443 = vand.u32 2147483647, %v433
  %vm444 = vcmp.eq.f32.partialorder %v443, 8.507059e+37
  %v445 = vand.u32 %v433, 2147483648
  %v446 = vor.u32 1.1754944e-38, %v445
  %v447 = vsel %vm444, %v446, %v442
  %v448 = vmul.f32 1.0, %v447
  %450 = vrot.lane.b32.xlu0 %v448, 96
  %v451 = vpop.permute.xlu0 %450
  %v453 = vmul.f32 %v429, %v451
  %454 = vrot.lane.b32.xlu0 %v448, 64
  %v455 = vpop.permute.xlu0 %454
  %v457 = vmul.f32 %v393, %v455
  %v458 = vadd.f32 %v453, %v457
  %v459 = vtanh.pop %v458
  %460 = vrot.lane.b32.xlu0 %v448, 32
  %v461 = vpop.permute.xlu0 %460
  %v463 = vmul.f32 %v459, %v461
  %464 = vset.pattern.permute.xlu0 7
  %465 = vperm.xlu0 %464, %v23
  %v466 = vpop.permute.xlu0 %465
  %v468 = vmul.f32 %v466, %v36
  %v469 = vadd.f32 %v468, %v40
  %v471 = vsel %vm79, %v463, 0
  %473 = vmatpush.msra.mxu0 0.0
  %474 = vmatpush.msra.mxu0 0.0
  %475 = vmatpush.msra.mxu0 0.0
  %476 = vmatpush.msra.mxu0 0.0
  %477 = vmatpush.msra.mxu0 0.0
  %478 = vmatpush.msra.mxu0 0.0
  %479 = vmatpush.msra.mxu0 0.0
  %480 = vmatpush.msra.mxu0 0.0
  %481 = vmatpush.msra.mxu0 0.0
  %482 = vmatpush.msra.mxu0 0.0
  %483 = vmatpush.msra.mxu0 0.0
  %484 = vmatpush.msra.mxu0 0.0
  %485 = vmatpush.msra.mxu0 %v28
  %486 = vmatpush.msra.mxu0 %v27
  %487 = vmatpush.msra.mxu0 %v26
  %488 = vmatpush.msra.mxu0 %v25
  %489 = vmatmul.f32.gmra.mxu0 %v471
  %v490 = vpop.f32.mrf.mxu0
  %v491 = vadd.f32 0.0, %v490
  %492 = vdwg.mxu0
  %v493 = vadd.f32 %v469, %v491
  %v494 = vtanh.pop %v493
  %v495 = vxor.u32 %v493, 2147483648
  %v496 = vmul.f32 %v495, 1.442695
  %v497 = vpow.pop %v496
  %v498 = vadd.f32 %v497, 1.0
  %v499 = vrcp.pop %v498
  %v500 = vmul.f32 %v498, %v499
  %v501 = vsub.f32 1.0, %v500
  %v502 = vmul.f32 %v499, %v501
  %v503 = vadd.f32 %v499, %v502
  %vm504 = vweird.f32 %v498
  %vm505 = vweird.f32 %v499
  %vm506 = vmor %vm504, %vm505
  %v507 = vsel %vm506, %v499, %v503
  %v508 = vand.u32 2147483647, %v498
  %vm509 = vcmp.eq.f32.partialorder %v508, 8.507059e+37
  %v510 = vand.u32 %v498, 2147483648
  %v511 = vor.u32 1.1754944e-38, %v510
  %v512 = vsel %vm509, %v511, %v507
  %v513 = vmul.f32 1.0, %v512
  %515 = vrot.lane.b32.xlu0 %v513, 96
  %v516 = vpop.permute.xlu0 %515
  %v518 = vmul.f32 %v494, %v516
  %519 = vrot.lane.b32.xlu0 %v513, 64
  %v520 = vpop.permute.xlu0 %519
  %v522 = vmul.f32 %v458, %v520
  %v523 = vadd.f32 %v518, %v522
  %v524 = vtanh.pop %v523
  %525 = vrot.lane.b32.xlu0 %v513, 32
  %v526 = vpop.permute.xlu0 %525
  %v528 = vmul.f32 %v524, %v526
  %v529 = vld [vmem:[%s4] sm:$0xff]
  %v530 = vld [vmem:[%s4 + $0x8] sm:$0xff]
  %v531 = vld [vmem:[%s4 + $0x10] sm:$0xff]
  %v532 = vld [vmem:[%s4 + $0x18] sm:$0xff]
  %v533 = vld [vmem:[%s5] sm:$0x1]
  %v535 = vperm.slane %v533, 0
  %v538 = vsel %vm79, %v528, 0
  %540 = vmatpush.msra.mxu0 0.0
  %541 = vmatpush.msra.mxu0 0.0
  %542 = vmatpush.msra.mxu0 0.0
  %543 = vmatpush.msra.mxu0 0.0
  %544 = vmatpush.msra.mxu0 0.0
  %545 = vmatpush.msra.mxu0 0.0
  %546 = vmatpush.msra.mxu0 0.0
  %547 = vmatpush.msra.mxu0 0.0
  %548 = vmatpush.msra.mxu0 0.0
  %549 = vmatpush.msra.mxu0 0.0
  %550 = vmatpush.msra.mxu0 0.0
  %551 = vmatpush.msra.mxu0 0.0
  %552 = vmatpush.msra.mxu0 %v532
  %553 = vmatpush.msra.mxu0 %v531
  %554 = vmatpush.msra.mxu0 %v530
  %555 = vmatpush.msra.mxu0 %v529
  %556 = vmatmul.f32.gmra.mxu0 %v538
  %v557 = vpop.f32.mrf.mxu0
  %v558 = vadd.f32 %v535, %v557
  %559 = vdwg.mxu0
  %560 = vmax.xlane.f32.xlu0 %v558
  %v561 = vpop.xlane.xlu0 %560
  %v562 = vsub.f32 %v558, %v561
  %v563 = vmul.f32 %v562, 1.442695
  %v564 = vpow.pop %v563
  %565 = vadd.xlane.f32.xlu0 %v564
  %v566 = vpop.xlane.xlu0 %565
  %v567 = vrcp.pop %v566
  %v568 = vmul.f32 %v566, %v567
  %v569 = vsub.f32 1.0, %v568
  %v570 = vmul.f32 %v567, %v569
  %v571 = vadd.f32 %v567, %v570
  %vm572 = vweird.f32 %v566
  %vm573 = vweird.f32 %v567
  %vm574 = vmor %vm572, %vm573
  %v575 = vsel %vm574, %v567, %v571
  %v576 = vand.u32 2147483647, %v566
  %vm577 = vcmp.eq.f32.partialorder %v576, 8.507059e+37
  %v578 = vand.u32 %v566, 2147483648
  %v579 = vor.u32 1.1754944e-38, %v578
  %v580 = vsel %vm577, %v579, %v575
  %v581 = vmul.f32 %v564, %v580
  %582 = vst [vmem:[%s6] sm:$0xff] %v581
  // Predicated region
  $region26: #{lstm_forward.1} parent=0 // pred_check
    _
  $region27: #{lstm_forward.1} parent=0 // pred_check_branch
    %584 = sbr.rel (0) target = $region29
  $region28: #{lstm_forward.1} parent=0 // pred_region
    _
  $region29: #{lstm_forward.1} parent=0 // pred_fallthru
    _
  // Predicated region
  $region30: #{lstm_forward.1} parent=0 // pred_check
    _
  $region31: #{lstm_forward.1} parent=0 // pred_check_branch
    %586 = sbr.rel (0) target = $region33
  $region32: #{lstm_forward.1} parent=0 // pred_region
    _
  $region33: #{lstm_forward.1} parent=0 // pred_fallthru
    _

</llo_original>
